<compile_context>
chip_gen: v7x
topology: tpu7x:2x2x1
jax: 0.10.0
libtpu: 0.0.40
codegen_flags: <defaults>
</compile_context>

<pallas_src>
import functools

import jax
import jax.numpy as jnp
from jax.experimental import pallas as pl
from jax.experimental.pallas import tpu as pltpu


def _ce_dice_stats_kernel(logits_ref, target_ref, stats_ref,
                          inter_acc, cardp_acc, cardt_acc, ce_acc, cnt_acc,
                          *, num_classes, ignore_index, hw_valid,
                          tile_rows, tiles_per_chunk, any_oob):
    """Accumulate CE / dice partial statistics over one (batch, chunk) stream.

    logits_ref: (1, C, T, 128)   target_ref: (1, T, 128) int32
    stats_ref : (1, 3C+2, 128)   lane-partial sums, written on the last tile
    """
    C = num_classes
    t_idx = pl.program_id(2)
    blk = pl.program_id(1) * tiles_per_chunk + t_idx      # un-clamped block index
    tile_elems = tile_rows * 128

    @pl.when(t_idx == 0)
    def _init():
        inter_acc[...] = jnp.zeros_like(inter_acc)
        cardp_acc[...] = jnp.zeros_like(cardp_acc)
        cardt_acc[...] = jnp.zeros_like(cardt_acc)
        ce_acc[...] = jnp.zeros_like(ce_acc)
        cnt_acc[...] = jnp.zeros_like(cnt_acc)

    def accumulate(x_in, tgt, card_mask):
        # x_in: (C, T, 128) input dtype; tgt: (1, T, 128) int32;
        # card_mask: None or f32 (1, T, 128) in-bounds mask for card(probs).
        if x_in.dtype == jnp.bfloat16:
            # bf16 VALU path (v6e/v7x): max / subtract on packed bf16 vregs; only
            # the exp argument is promoted.  Accumulation stays f32 below.
            m = jnp.max(x_in, axis=0, keepdims=True)
            e = jnp.exp((x_in - m).astype(jnp.float32))
        else:
            x = x_in.astype(jnp.float32)
            m = jnp.max(x, axis=0, keepdims=True)
            e = jnp.exp(x - m)                             # (C, T, 128)
        s = jnp.sum(e, axis=0, keepdims=True)              # (1, T, 128)
        probs = e * pl.reciprocal(s, approx=True)          # EUP slot; ~1e-4 rel err

        cls = jax.lax.broadcasted_iota(jnp.int32, (C, tile_rows, 128), 0)
        onehot = (cls == tgt).astype(jnp.float32)          # all-zero row for ignore
        valid = (tgt != ignore_index).astype(jnp.float32)

        # Dice intersection product, reused for CE:
        #   p_tgt = softmax prob of the target class; it is exactly 0 for ignored
        #   pixels, so adding (1 - valid) makes log() return 0 there without an
        #   extra valid-multiply.  (The approx reciprocal leaks ~1e-4 into CE;
        #   accepted — covered by the loss-level tolerance.)
        po = probs * onehot                                # (C, T, 128)
        p_tgt = jnp.sum(po, axis=0, keepdims=True)         # (1, T, 128)
        ce_terms = jnp.log(p_tgt + (1.0 - valid))          # +log p; negated in epilogue
        probs_card = probs if card_mask is None else probs * card_mask

        # Lane-partials; the final 128-lane reduction happens in the cheap JAX
        # epilogue (keeps the kernel free of cross-lane XLU reductions).
        # NOTE: card(probs) intentionally includes ignore_index pixels, matching
        # the torch DiceLoss reference.
        inter_acc[...] += jnp.sum(po, axis=1)              # (C, 128)
        cardp_acc[...] += jnp.sum(probs_card, axis=1)      # (C, 128)
        cardt_acc[...] += jnp.sum(onehot, axis=1)          # (C, 128)
        ce_acc[...] += jnp.sum(ce_terms, axis=1)           # (1, 128)
        cnt_acc[...] += jnp.sum(valid, axis=1)             # (1, 128)

    if any_oob:
        # Mask work only on tiles that cross hw_valid (pad region / partial tail /
        # clamped duplicate blocks); interior tiles take the unmasked fast path.
        base = blk * tile_elems

        @pl.when(base + tile_elems <= hw_valid)
        def _interior():
            accumulate(logits_ref[0], target_ref[...], None)

        @pl.when(base + tile_elems > hw_valid)
        def _boundary():
            row = jax.lax.broadcasted_iota(jnp.int32, (1, tile_rows, 128), 1)
            lane = jax.lax.broadcasted_iota(jnp.int32, (1, tile_rows, 128), 2)
            inb = (base + row * 128 + lane) < hw_valid            # bool (1, T, 128)
            x_raw = logits_ref[0]
            x = jnp.where(inb, x_raw, jnp.zeros_like(x_raw))      # garbage/pad -> 0
            tgt = jnp.where(inb, target_ref[...], ignore_index)   # -> ignored
            accumulate(x, tgt, inb.astype(jnp.float32))
    else:
        accumulate(logits_ref[0], target_ref[...], None)

    @pl.when(t_idx == pl.num_programs(2) - 1)
    def _finalize():
        stats_ref[0, 0:C, :] = inter_acc[...]
        stats_ref[0, C:2 * C, :] = cardp_acc[...]
        stats_ref[0, 2 * C:3 * C, :] = cardt_acc[...]
        stats_ref[0, 3 * C:3 * C + 1, :] = ce_acc[...]
        stats_ref[0, 3 * C + 1:3 * C + 2, :] = cnt_acc[...]


def _ceil_div(a, b):
    return -(-a // b)


def _tpu_config():
    """Best-effort (tensorcores per device, VMEM capacity in bytes)."""
    vmem_cap = 64 * 1024 * 1024            # conservative fallback (v7x per-core VMEM)
    try:
        cap = int(pltpu.get_tpu_info().vmem_capacity_bytes)
        if cap > 0:
            vmem_cap = cap
    except Exception:
        pass
    num_tc = 1
    try:
        kind = jax.devices()[0].device_kind.lower()
        # v7x (2 TensorCores) and megacore chips shard "parallel" grid axes.
        if ("7" in kind) or ("v4" in kind) or ("v5p" in kind):
            num_tc = 2
    except Exception:
        pass
    return num_tc, vmem_cap


def ce1_dice2_loss(logits_nchw, target, *, num_classes,
                   ce_weight=0.5, dice_weight=1.0,
                   smooth=1e-10, ignore_index=255):
    """Matches CE1Dice2Loss.forward(input, target) with default kwargs."""
    N, C, H, W = logits_nchw.shape
    assert C == num_classes
    assert not (0 <= ignore_index < num_classes)
    if target.ndim == 4:                      # N,1,H,W -> N,H,W (torch.squeeze(dim=1))
        target = target[:, 0]
    # TODO(synk): bilinear F.interpolate branch (taken only when logits and target
    # spatial sizes differ) is not implemented; shapes must match here.
    assert target.shape == (N, H, W)

    HW = H * W
    s = _ceil_div(HW, 128)                    # spatial rows of 128 lanes
    hw128 = s * 128

    num_tc, vmem_cap = _tpu_config()
    small_vmem = vmem_cap <= 64 * 1024 * 1024            # v7x (64 MiB per TC)
    vmem_limit = min((vmem_cap // 4) * 3, 96 * 1024 * 1024)

    in_bytes = jnp.dtype(logits_nchw.dtype).itemsize
    per_row = (2 * C * 128 * in_bytes         # double-buffered logits blocks
               + 2 * 128 * 4                  # double-buffered int32 target blocks
               + 7 * C * 128 * 4              # live f32 (C, T, 128) temporaries
               + 8 * 128 * 4)                 # live f32 (1, T, 128) temporaries
    # Big tiles amortize the ~0.35us/grid-step overhead; keep //3 headroom on the
    # 64 MiB v7x, //2 on 128 MiB v5e/v6e, with a generation-aware hard cap.
    tile_budget = vmem_limit // 3 if small_vmem else vmem_limit // 2
    rows_hard_cap = 1024 if small_vmem else 2048
    rows_cap = max(8, min(rows_hard_cap, (tile_budget // per_row) // 8 * 8))

    # Split the spatial axis only when it buys TensorCore parallelism: multi-TC
    # chip with a batch that doesn't shard evenly (incl. N == 1).  Single-TC
    # chips (v5e/v6e) never split — it would only shrink tiles.
    nsplit = num_tc if (num_tc > 1 and N % num_tc != 0 and s >= num_tc * 8) else 1

    if nsplit == 1 and s <= rows_cap:
        tile_rows, tiles_per_chunk = s, 1     # single full-extent tile per batch
    else:
        per_chunk = _ceil_div(s, nsplit)
        tile_rows = max(8, (min(rows_cap, per_chunk) // 8) * 8)
        tiles_per_chunk = _ceil_div(s, nsplit * tile_rows)
    s_blocks = _ceil_div(s, tile_rows)
    coverage = nsplit * tiles_per_chunk * tile_rows
    any_oob = coverage * 128 > HW             # pad region / ragged tail needs masking

    # Keep the caller's logits dtype in HBM (bf16 passes through at half the DMA
    # bytes); any promotion happens inside the kernel, after the load.
    logits_flat = logits_nchw.reshape(N, C, HW)
    tgt_flat = target.reshape(N, HW).astype(jnp.int32)
    if hw128 != HW:
        # TODO(synk): the lane-dense (..., S, 128) view needs HW % 128 == 0; this
        # minimal (<128 element per row) pad is still one extra pass over logits.
        logits_flat = jnp.pad(logits_flat, ((0, 0), (0, 0), (0, hw128 - HW)))
        tgt_flat = jnp.pad(tgt_flat, ((0, 0), (0, hw128 - HW)),
                           constant_values=ignore_index)
    logits4 = logits_flat.reshape(N, C, s, 128)   # free reshape when no pad happened
    tgt3 = tgt_flat.reshape(N, s, 128)

    # Clamp any trailing grid steps (nsplit rounding) onto the last real block;
    # their contributions are masked out in the kernel via hw_valid.
    max_blk = s_blocks - 1
    need_clamp = nsplit * tiles_per_chunk > s_blocks

    def _blk(c, t):
        b = c * tiles_per_chunk + t
        return jnp.minimum(b, max_blk) if need_clamp else b

    R = 3 * C + 2                             # inter[C], cardp[C], cardt[C], ce, cnt
    kernel = functools.partial(
        _ce_dice_stats_kernel, num_classes=C, ignore_index=ignore_index,
        hw_valid=HW, tile_rows=tile_rows, tiles_per_chunk=tiles_per_chunk,
        any_oob=any_oob)

    stats = pl.pallas_call(
        kernel,
        out_shape=jax.ShapeDtypeStruct((N * nsplit, R, 128), jnp.float32),
        grid_spec=pltpu.PrefetchScalarGridSpec(
            num_scalar_prefetch=0,
            grid=(N, nsplit, tiles_per_chunk),
            in_specs=[
                pl.BlockSpec((1, C, tile_rows, 128),
                             lambda b, c, t: (b, 0, _blk(c, t), 0)),
                pl.BlockSpec((1, tile_rows, 128),
                             lambda b, c, t: (b, _blk(c, t), 0)),
            ],
            out_specs=pl.BlockSpec((1, R, 128),
                                   lambda b, c, t: (b * nsplit + c, 0, 0)),
            scratch_shapes=[
                pltpu.VMEM((C, 128), jnp.float32),   # intersection partials
                pltpu.VMEM((C, 128), jnp.float32),   # card(probs) partials
                pltpu.VMEM((C, 128), jnp.float32),   # card(one-hot) partials
                pltpu.VMEM((1, 128), jnp.float32),   # sum(log p_target) partials
                pltpu.VMEM((1, 128), jnp.float32),   # valid-pixel-count partials
            ]),
        compiler_params=pltpu.CompilerParams(
            dimension_semantics=("parallel", "parallel", "arbitrary"),
            vmem_limit_bytes=int(vmem_limit)),
    )(logits4, tgt3)

    # Cheap scalar epilogue (plain JAX) — mirrors torch semantics exactly.
    per_batch = jnp.sum(stats.reshape(N, nsplit, R, 128), axis=(1, 3))   # (N, R)
    inter = per_batch[:, 0:C]
    cardp = per_batch[:, C:2 * C]
    cardt = per_batch[:, 2 * C:3 * C]
    ce_loss = -jnp.sum(per_batch[:, 3 * C]) / jnp.sum(per_batch[:, 3 * C + 1])
    dice_score = (2.0 * inter + smooth) / (cardp + cardt + smooth)
    dice_loss = jnp.mean(1.0 - dice_score)
    return ce_weight * ce_loss + dice_weight * dice_loss


def _reference_loss(logits, target, ce_weight=0.5, dice_weight=1.0, smooth=1e-10):
    """Pure-JAX reference (no ignore pixels present in the test data)."""
    C = logits.shape[1]
    x = logits.astype(jnp.float32)
    logp = jax.nn.log_softmax(x, axis=1)
    onehot = jax.nn.one_hot(target, C, axis=1, dtype=jnp.float32)
    ce = -jnp.mean(jnp.sum(onehot * logp, axis=1))
    probs = jax.nn.softmax(x, axis=1)
    inter = jnp.einsum('bchw,bchw->bc', probs, onehot)
    union = jnp.einsum('bchw->bc', probs) + jnp.einsum('bchw->bc', onehot)
    dice = jnp.mean(1.0 - (2.0 * inter + smooth) / (union + smooth))
    return ce_weight * ce + dice_weight * dice


if __name__ == "__main__":
    key = jax.random.PRNGKey(0)
    k1, k2, k3, k4 = jax.random.split(key, 4)

    # Case 1: small aligned shapes (HW % 128 == 0) — no padding, no mask path.
    N, C, H, W = 2, 4, 16, 16
    logits = jax.random.normal(k1, (N, C, H, W), dtype=jnp.float32)
    target = jax.random.randint(k2, (N, H, W), 0, C, dtype=jnp.int32)
    loss = jax.block_until_ready(ce1_dice2_loss(logits, target, num_classes=C))
    expected = _reference_loss(logits, target)
    # Tolerance accounts for the approximate EUP reciprocal in the softmax / CE.
    assert jnp.allclose(loss, expected, rtol=5e-3, atol=5e-3), (loss, expected)

    # Case 2: batch=1 with HW not a multiple of 128 — exercises the minimal pad and
    # the pl.when-gated boundary masking path.
    N2, C2, H2, W2 = 1, 4, 40, 36
    logits2 = jax.random.normal(k3, (N2, C2, H2, W2), dtype=jnp.float32)
    target2 = jax.random.randint(k4, (N2, H2, W2), 0, C2, dtype=jnp.int32)
    loss2 = jax.block_until_ready(ce1_dice2_loss(logits2, target2, num_classes=C2))
    expected2 = _reference_loss(logits2, target2)
    assert jnp.allclose(loss2, expected2, rtol=5e-3, atol=5e-3), (loss2, expected2)

    # Case 3: bf16 logits — exercises the packed bf16 max/subtract path.
    logits3 = logits.astype(jnp.bfloat16)
    loss3 = jax.block_until_ready(ce1_dice2_loss(logits3, target, num_classes=C))
    expected3 = _reference_loss(logits3.astype(jnp.float32), target)
    assert jnp.allclose(loss3, expected3, rtol=1e-2, atol=1e-2), (loss3, expected3)

    print("KERNEL_OK")
</pallas_src>

<mosaic_0001>
module attributes {stable_mosaic.version = 11 : i64} {
  func.func @_ce_dice_stats_kernel(%arg0: i32, %arg1: i32, %arg2: i32, %arg3: memref<1x4x2x128xf32, #tpu.memory_space<vmem>>, %arg4: memref<1x2x128xi32, #tpu.memory_space<vmem>>, %arg5: memref<1x14x128xf32, #tpu.memory_space<vmem>>, %arg6: memref<4x128xf32, #tpu.memory_space<vmem>>, %arg7: memref<4x128xf32, #tpu.memory_space<vmem>>, %arg8: memref<4x128xf32, #tpu.memory_space<vmem>>, %arg9: memref<1x128xf32, #tpu.memory_space<vmem>>, %arg10: memref<1x128xf32, #tpu.memory_space<vmem>>) attributes {dimension_semantics = [#tpu.dimension_semantics<parallel>, #tpu.dimension_semantics<parallel>, #tpu.dimension_semantics<arbitrary>], iteration_bounds = array<i64: 2, 1, 1>, scalar_prefetch = 0 : i64, scratch_operands = 5 : i64, tpu.core_type = #tpu.core_type<tc>, window_params = [{transform_indices = @transform_0, window_bounds = array<i64: 1, 4, 2, 128>}, {transform_indices = @transform_1, window_bounds = array<i64: 1, 2, 128>}, {transform_indices = @transform_2, window_bounds = array<i64: 1, 14, 128>}]} {
    %c0_i32 = arith.constant 0 : i32
    %0 = arith.cmpi eq, %arg2, %c0_i32 : i32
    %1 = arith.extui %0 : i1 to i32
    %c0_i32_0 = arith.constant 0 : i32
    %2 = arith.cmpi ne, %1, %c0_i32_0 : i32
    scf.if %2 {
      %cst_37 = arith.constant 0.000000e+00 : f32
      %55 = vector.broadcast %cst_37 : f32 to vector<4x128xf32>
      %c0_38 = arith.constant 0 : index
      %c0_39 = arith.constant 0 : index
      %56 = vector.load %arg6[%c0_38, %c0_39] : memref<4x128xf32, #tpu.memory_space<vmem>>, vector<4x128xf32>
      tpu.vector_store %arg6[%c0_38, %c0_39], %55 {strides = array<i32>} : memref<4x128xf32, #tpu.memory_space<vmem>>, vector<4x128xf32>,
      %cst_40 = arith.constant 0.000000e+00 : f32
      %57 = vector.broadcast %cst_40 : f32 to vector<4x128xf32>
      %c0_41 = arith.constant 0 : index
      %c0_42 = arith.constant 0 : index
      %58 = vector.load %arg7[%c0_41, %c0_42] : memref<4x128xf32, #tpu.memory_space<vmem>>, vector<4x128xf32>
      tpu.vector_store %arg7[%c0_41, %c0_42], %57 {strides = array<i32>} : memref<4x128xf32, #tpu.memory_space<vmem>>, vector<4x128xf32>,
      %cst_43 = arith.constant 0.000000e+00 : f32
      %59 = vector.broadcast %cst_43 : f32 to vector<4x128xf32>
      %c0_44 = arith.constant 0 : index
      %c0_45 = arith.constant 0 : index
      %60 = vector.load %arg8[%c0_44, %c0_45] : memref<4x128xf32, #tpu.memory_space<vmem>>, vector<4x128xf32>
      tpu.vector_store %arg8[%c0_44, %c0_45], %59 {strides = array<i32>} : memref<4x128xf32, #tpu.memory_space<vmem>>, vector<4x128xf32>,
      %cst_46 = arith.constant 0.000000e+00 : f32
      %61 = vector.broadcast %cst_46 : f32 to vector<1x128xf32>
      %c0_47 = arith.constant 0 : index
      %c0_48 = arith.constant 0 : index
      %62 = vector.load %arg9[%c0_47, %c0_48] : memref<1x128xf32, #tpu.memory_space<vmem>>, vector<1x128xf32>
      tpu.vector_store %arg9[%c0_47, %c0_48], %61 {strides = array<i32>} : memref<1x128xf32, #tpu.memory_space<vmem>>, vector<1x128xf32>,
      %cst_49 = arith.constant 0.000000e+00 : f32
      %63 = vector.broadcast %cst_49 : f32 to vector<1x128xf32>
      %c0_50 = arith.constant 0 : index
      %c0_51 = arith.constant 0 : index
      %64 = vector.load %arg10[%c0_50, %c0_51] : memref<1x128xf32, #tpu.memory_space<vmem>>, vector<1x128xf32>
      tpu.vector_store %arg10[%c0_50, %c0_51], %63 {strides = array<i32>} : memref<1x128xf32, #tpu.memory_space<vmem>>, vector<1x128xf32>,
    } else {
    }
    %c0 = arith.constant 0 : index
    %c0_1 = arith.constant 0 : index
    %c0_2 = arith.constant 0 : index
    %c0_3 = arith.constant 0 : index
    %3 = vector.load %arg3[%c0, %c0_1, %c0_2, %c0_3] : memref<1x4x2x128xf32, #tpu.memory_space<vmem>>, vector<1x4x2x128xf32>
    %4 = vector.shape_cast %3 : vector<1x4x2x128xf32> to vector<4x2x128xf32>
    %c0_4 = arith.constant 0 : index
    %c0_5 = arith.constant 0 : index
    %c0_6 = arith.constant 0 : index
    %5 = vector.load %arg4[%c0_4, %c0_5, %c0_6] : memref<1x2x128xi32, #tpu.memory_space<vmem>>, vector<1x2x128xi32>
    %cst = arith.constant dense<0xFF800000> : vector<2x128xf32>
    %6 = vector.multi_reduction <maximumf>, %4, %cst [0] : vector<4x2x128xf32> to vector<2x128xf32>
    %7 = vector.shape_cast %6 : vector<2x128xf32> to vector<1x2x128xf32>
    %8 = vector.broadcast %7 : vector<1x2x128xf32> to vector<4x2x128xf32>
    %9 = arith.subf %4, %8 : vector<4x2x128xf32>
    %10 = math.exp %9 : vector<4x2x128xf32>
    %cst_7 = arith.constant dense<0.000000e+00> : vector<2x128xf32>
    %11 = vector.multi_reduction <add>, %10, %cst_7 [0] : vector<4x2x128xf32> to vector<2x128xf32>
    %12 = vector.shape_cast %11 : vector<2x128xf32> to vector<1x2x128xf32>
    %13 = tpu.reciprocal %12 {approx = true} : vector<1x2x128xf32> -> vector<1x2x128xf32>
    %14 = vector.broadcast %13 : vector<1x2x128xf32> to vector<4x2x128xf32>
    %15 = arith.mulf %10, %14 : vector<4x2x128xf32>
    %16 = tpu.iota {dimensions = array<i32: 0>} : vector<4x2x128xi32>
    %17 = vector.broadcast %5 : vector<1x2x128xi32> to vector<4x2x128xi32>
    %18 = arith.cmpi eq, %16, %17 : vector<4x2x128xi32>
    %19 = arith.extui %18 : vector<4x2x128xi1> to vector<4x2x128xi32>
    %20 = arith.sitofp %19 : vector<4x2x128xi32> to vector<4x2x128xf32>
    %c255_i32 = arith.constant 255 : i32
    %21 = vector.broadcast %c255_i32 : i32 to vector<1x2x128xi32>
    %22 = arith.cmpi ne, %5, %21 : vector<1x2x128xi32>
    %23 = arith.extui %22 : vector<1x2x128xi1> to vector<1x2x128xi32>
    %24 = arith.sitofp %23 : vector<1x2x128xi32> to vector<1x2x128xf32>
    %25 = arith.mulf %15, %20 : vector<4x2x128xf32>
    %cst_8 = arith.constant dense<0.000000e+00> : vector<2x128xf32>
    %26 = vector.multi_reduction <add>, %25, %cst_8 [0] : vector<4x2x128xf32> to vector<2x128xf32>
    %27 = vector.shape_cast %26 : vector<2x128xf32> to vector<1x2x128xf32>
    %cst_9 = arith.constant 1.000000e+00 : f32
    %28 = vector.broadcast %cst_9 : f32 to vector<1x2x128xf32>
    %29 = arith.subf %28, %24 : vector<1x2x128xf32>
    %30 = arith.addf %27, %29 : vector<1x2x128xf32>
    %31 = math.log %30 : vector<1x2x128xf32>
    %c0_10 = arith.constant 0 : index
    %c0_11 = arith.constant 0 : index
    %32 = vector.load %arg6[%c0_10, %c0_11] : memref<4x128xf32, #tpu.memory_space<vmem>>, vector<4x128xf32>
    %cst_12 = arith.constant dense<0.000000e+00> : vector<4x128xf32>
    %33 = vector.multi_reduction <add>, %25, %cst_12 [1] : vector<4x2x128xf32> to vector<4x128xf32>
    %34 = arith.addf %32, %33 : vector<4x128xf32>
    %c0_13 = arith.constant 0 : index
    %c0_14 = arith.constant 0 : index
    %35 = vector.load %arg6[%c0_13, %c0_14] : memref<4x128xf32, #tpu.memory_space<vmem>>, vector<4x128xf32>
    tpu.vector_store %arg6[%c0_13, %c0_14], %34 {strides = array<i32>} : memref<4x128xf32, #tpu.memory_space<vmem>>, vector<4x128xf32>,
    %c0_15 = arith.constant 0 : index
    %c0_16 = arith.constant 0 : index
    %36 = vector.load %arg7[%c0_15, %c0_16] : memref<4x128xf32, #tpu.memory_space<vmem>>, vector<4x128xf32>
    %cst_17 = arith.constant dense<0.000000e+00> : vector<4x128xf32>
    %37 = vector.multi_reduction <add>, %15, %cst_17 [1] : vector<4x2x128xf32> to vector<4x128xf32>
    %38 = arith.addf %36, %37 : vector<4x128xf32>
    %c0_18 = arith.constant 0 : index
    %c0_19 = arith.constant 0 : index
    %39 = vector.load %arg7[%c0_18, %c0_19] : memref<4x128xf32, #tpu.memory_space<vmem>>, vector<4x128xf32>
    tpu.vector_store %arg7[%c0_18, %c0_19], %38 {strides = array<i32>} : memref<4x128xf32, #tpu.memory_space<vmem>>, vector<4x128xf32>,
    %c0_20 = arith.constant 0 : index
    %c0_21 = arith.constant 0 : index
    %40 = vector.load %arg8[%c0_20, %c0_21] : memref<4x128xf32, #tpu.memory_space<vmem>>, vector<4x128xf32>
    %cst_22 = arith.constant dense<0.000000e+00> : vector<4x128xf32>
    %41 = vector.multi_reduction <add>, %20, %cst_22 [1] : vector<4x2x128xf32> to vector<4x128xf32>
    %42 = arith.addf %40, %41 : vector<4x128xf32>
    %c0_23 = arith.constant 0 : index
    %c0_24 = arith.constant 0 : index
    %43 = vector.load %arg8[%c0_23, %c0_24] : memref<4x128xf32, #tpu.memory_space<vmem>>, vector<4x128xf32>
    tpu.vector_store %arg8[%c0_23, %c0_24], %42 {strides = array<i32>} : memref<4x128xf32, #tpu.memory_space<vmem>>, vector<4x128xf32>,
    %c0_25 = arith.constant 0 : index
    %c0_26 = arith.constant 0 : index
    %44 = vector.load %arg9[%c0_25, %c0_26] : memref<1x128xf32, #tpu.memory_space<vmem>>, vector<1x128xf32>
    %cst_27 = arith.constant dense<0.000000e+00> : vector<1x128xf32>
    %45 = vector.multi_reduction <add>, %31, %cst_27 [1] : vector<1x2x128xf32> to vector<1x128xf32>
    %46 = arith.addf %44, %45 : vector<1x128xf32>
    %c0_28 = arith.constant 0 : index
    %c0_29 = arith.constant 0 : index
    %47 = vector.load %arg9[%c0_28, %c0_29] : memref<1x128xf32, #tpu.memory_space<vmem>>, vector<1x128xf32>
    tpu.vector_store %arg9[%c0_28, %c0_29], %46 {strides = array<i32>} : memref<1x128xf32, #tpu.memory_space<vmem>>, vector<1x128xf32>,
    %c0_30 = arith.constant 0 : index
    %c0_31 = arith.constant 0 : index
    %48 = vector.load %arg10[%c0_30, %c0_31] : memref<1x128xf32, #tpu.memory_space<vmem>>, vector<1x128xf32>
    %cst_32 = arith.constant dense<0.000000e+00> : vector<1x128xf32>
    %49 = vector.multi_reduction <add>, %24, %cst_32 [1] : vector<1x2x128xf32> to vector<1x128xf32>
    %50 = arith.addf %48, %49 : vector<1x128xf32>
    %c0_33 = arith.constant 0 : index
    %c0_34 = arith.constant 0 : index
    %51 = vector.load %arg10[%c0_33, %c0_34] : memref<1x128xf32, #tpu.memory_space<vmem>>, vector<1x128xf32>
    tpu.vector_store %arg10[%c0_33, %c0_34], %50 {strides = array<i32>} : memref<1x128xf32, #tpu.memory_space<vmem>>, vector<1x128xf32>,
    %c0_i32_35 = arith.constant 0 : i32
    %52 = arith.cmpi eq, %arg2, %c0_i32_35 : i32
    %53 = arith.extui %52 : i1 to i32
    %c0_i32_36 = arith.constant 0 : i32
    %54 = arith.cmpi ne, %53, %c0_i32_36 : i32
    scf.if %54 {
      %c0_37 = arith.constant 0 : index
      %c0_38 = arith.constant 0 : index
      %55 = vector.load %arg6[%c0_37, %c0_38] : memref<4x128xf32, #tpu.memory_space<vmem>>, vector<4x128xf32>
      %c0_39 = arith.constant 0 : index
      %c0_40 = arith.constant 0 : index
      %c0_41 = arith.constant 0 : index
      %56 = vector.load %arg5[%c0_39, %c0_40, %c0_41] : memref<1x14x128xf32, #tpu.memory_space<vmem>>, vector<1x4x128xf32>
      %57 = vector.shape_cast %56 : vector<1x4x128xf32> to vector<4x128xf32>
      %58 = vector.shape_cast %55 : vector<4x128xf32> to vector<1x4x128xf32>
      tpu.vector_store %arg5[%c0_39, %c0_40, %c0_41], %58 {strides = array<i32>} : memref<1x14x128xf32, #tpu.memory_space<vmem>>, vector<1x4x128xf32>,
      %c0_42 = arith.constant 0 : index
      %c0_43 = arith.constant 0 : index
      %59 = vector.load %arg7[%c0_42, %c0_43] : memref<4x128xf32, #tpu.memory_space<vmem>>, vector<4x128xf32>
      %c0_44 = arith.constant 0 : index
      %c4 = arith.constant 4 : index
      %c0_45 = arith.constant 0 : index
      %60 = vector.load %arg5[%c0_44, %c4, %c0_45] : memref<1x14x128xf32, #tpu.memory_space<vmem>>, vector<1x4x128xf32>
      %61 = vector.shape_cast %60 : vector<1x4x128xf32> to vector<4x128xf32>
      %62 = vector.shape_cast %59 : vector<4x128xf32> to vector<1x4x128xf32>
      tpu.vector_store %arg5[%c0_44, %c4, %c0_45], %62 {strides = array<i32>} : memref<1x14x128xf32, #tpu.memory_space<vmem>>, vector<1x4x128xf32>,
      %c0_46 = arith.constant 0 : index
      %c0_47 = arith.constant 0 : index
      %63 = vector.load %arg8[%c0_46, %c0_47] : memref<4x128xf32, #tpu.memory_space<vmem>>, vector<4x128xf32>
      %c0_48 = arith.constant 0 : index
      %c8 = arith.constant 8 : index
      %c0_49 = arith.constant 0 : index
      %64 = vector.load %arg5[%c0_48, %c8, %c0_49] : memref<1x14x128xf32, #tpu.memory_space<vmem>>, vector<1x4x128xf32>
      %65 = vector.shape_cast %64 : vector<1x4x128xf32> to vector<4x128xf32>
      %66 = vector.shape_cast %63 : vector<4x128xf32> to vector<1x4x128xf32>
      tpu.vector_store %arg5[%c0_48, %c8, %c0_49], %66 {strides = array<i32>} : memref<1x14x128xf32, #tpu.memory_space<vmem>>, vector<1x4x128xf32>,
      %c0_50 = arith.constant 0 : index
      %c0_51 = arith.constant 0 : index
      %67 = vector.load %arg9[%c0_50, %c0_51] : memref<1x128xf32, #tpu.memory_space<vmem>>, vector<1x128xf32>
      %c0_52 = arith.constant 0 : index
      %c12 = arith.constant 12 : index
      %c0_53 = arith.constant 0 : index
      %68 = vector.load %arg5[%c0_52, %c12, %c0_53] : memref<1x14x128xf32, #tpu.memory_space<vmem>>, vector<1x1x128xf32>
      %69 = vector.shape_cast %68 : vector<1x1x128xf32> to vector<1x128xf32>
      %70 = vector.shape_cast %67 : vector<1x128xf32> to vector<1x1x128xf32>
      tpu.vector_store %arg5[%c0_52, %c12, %c0_53], %70 {strides = array<i32>} : memref<1x14x128xf32, #tpu.memory_space<vmem>>, vector<1x1x128xf32>,
      %c0_54 = arith.constant 0 : index
      %c0_55 = arith.constant 0 : index
      %71 = vector.load %arg10[%c0_54, %c0_55] : memref<1x128xf32, #tpu.memory_space<vmem>>, vector<1x128xf32>
      %c0_56 = arith.constant 0 : index
      %c13 = arith.constant 13 : index
      %c0_57 = arith.constant 0 : index
      %72 = vector.load %arg5[%c0_56, %c13, %c0_57] : memref<1x14x128xf32, #tpu.memory_space<vmem>>, vector<1x1x128xf32>
      %73 = vector.shape_cast %72 : vector<1x1x128xf32> to vector<1x128xf32>
      %74 = vector.shape_cast %71 : vector<1x128xf32> to vector<1x1x128xf32>
      tpu.vector_store %arg5[%c0_56, %c13, %c0_57], %74 {strides = array<i32>} : memref<1x14x128xf32, #tpu.memory_space<vmem>>, vector<1x1x128xf32>,
    } else {
    }
    return
  }
  func.func @transform_0(%arg0: i32, %arg1: i32, %arg2: i32) -> (i32, i32, i32, i32) {
    %c1_i32 = arith.constant 1 : i32
    %0 = arith.muli %arg1, %c1_i32 : i32
    %1 = arith.addi %0, %arg2 : i32
    %c0_i32 = arith.constant 0 : i32
    %c0_i32_0 = arith.constant 0 : i32
    %c0_i32_1 = arith.constant 0 : i32
    return %arg0, %c0_i32, %1, %c0_i32_0 : i32, i32, i32, i32
  }
  func.func @transform_1(%arg0: i32, %arg1: i32, %arg2: i32) -> (i32, i32, i32) {
    %c1_i32 = arith.constant 1 : i32
    %0 = arith.muli %arg1, %c1_i32 : i32
    %1 = arith.addi %0, %arg2 : i32
    %c0_i32 = arith.constant 0 : i32
    %c0_i32_0 = arith.constant 0 : i32
    return %arg0, %1, %c0_i32 : i32, i32, i32
  }
  func.func @transform_2(%arg0: i32, %arg1: i32, %arg2: i32) -> (i32, i32, i32) {
    %c1_i32 = arith.constant 1 : i32
    %0 = arith.muli %arg0, %c1_i32 : i32
    %1 = arith.addi %0, %arg1 : i32
    %c0_i32 = arith.constant 0 : i32
    %c0_i32_0 = arith.constant 0 : i32
    %c0_i32_1 = arith.constant 0 : i32
    return %1, %c0_i32, %c0_i32_0 : i32, i32, i32
  }
}

</mosaic_0001>

<llo_original>
// kernel: tpu_custom_call.1
$region0: #{tpu_custom_call.1}
  #allocation0 [shape = 'u32[]', space=smem, size = 0x4, offset = 0x4, fixed_abs, tag = 'smem constant byte address 0x4 - core index']
  #allocation1 [shape = 'u32[144,128]{1,0:T(1,128)}', space=vmem, size = 0x12000, scoped, tag = 'internal scratch']
  #allocation2 [shape = 'f32[4,128]{1,0:T(4,128)}', space=vmem, size = 0x800, scoped, tag = 'scratch operand']
  #allocation3 [shape = 'f32[4,128]{1,0:T(4,128)}', space=vmem, size = 0x800, scoped, tag = 'scratch operand']
  #allocation4 [shape = 'f32[4,128]{1,0:T(4,128)}', space=vmem, size = 0x800, scoped, tag = 'scratch operand']
  #allocation5 [shape = 'f32[1,128]{1,0:T(1,128)}', space=vmem, size = 0x200, scoped, tag = 'scratch operand']
  #allocation6 [shape = 'f32[1,128]{1,0:T(1,128)}', space=vmem, size = 0x200, scoped, tag = 'scratch operand']
  %s0 = inlined_call_operand.hbm [shape: f32[2,4,2,128], index: 0, kind: input, shape index: {}]
  %s1 = inlined_call_operand.hbm [shape: s32[2,2,128], index: 1, kind: input, shape index: {}]
  %s2 = inlined_call_operand.vmem [shape: f32[2,14,128], index: 2, kind: output, shape index: {}]
  %s3 = sld [smem:[#allocation0]]
  $region57: #{tpu_custom_call.1} parent=0
    _
  %s5 = ssub.s32 1, %s3
  %s6 = scalar_select 0, %s5, %s3
  $region1: #{tpu_custom_call.1} parent=0
    #allocation7 [shape = 'u8[8192]{0}', space=vmem, size = 0x2000, scoped, tag = 'input window, operand 0']
    #allocation8 [shape = 's32[2]{0}', space=sflag, size = 0x8, scoped, tag = 'scoped memory for tpu_custom_call.1']
    #allocation9 [shape = 'u8[2048]{0}', space=vmem, size = 0x800, scoped, tag = 'input window, operand 1']
    #allocation10 [shape = 's32[2]{0}', space=sflag, size = 0x8, scoped, tag = 'scoped memory for tpu_custom_call.1']
    %7 = vsyncpa [#allocation8], 0
    %s8 = scalar_lea.sflag [#allocation8], 1
    %9 = vsyncpa %s8, 0
    %10 = vsyncpa [#allocation10], 0
    %s11 = scalar_lea.sflag [#allocation10], 1
    %12 = vsyncpa %s11, 0
    loop: start=0, step=1, limit=4
    $region2: #{tpu_custom_call.1} parent=1 // loop_pre_header
      _
    $region3: #{tpu_custom_call.1} parent=1 // loop_header
      %s14 = sphi 0, %s18
      %p15 = scmp.ge.s32.totalorder %s14, 4
      %s21 = sphi 0, %s40
      %s22 = sphi 0, %s36
      %s23 = sphi 0, %s32
      %s24 = sphi 0, %s21
      %s25 = sphi 0, %s22
      %s26 = sphi 0, %s23
      %s27 = sphi 0, %s24
      %s28 = sphi 0, %s25
      %s29 = sphi 0, %s26
      %s47 = sphi 0, %s49
      %s50 = sphi 0, %s47
      %s51 = sphi 0, %s50
      %s67 = sphi 0, %s51
      %s77 = sphi 0, %s79
      %s80 = sphi 0, %s77
      %s81 = sphi 0, %s80
      %s97 = sphi 0, %s81
      %s105 = sphi 0, %s107
      %s108 = sphi 0, %s105
      %s109 = sphi 0, %s108
      %s125 = sphi 0, %s109
    $region4: #{tpu_custom_call.1} parent=1 // loop_header_branch
      %17 = sbr.rel (%p15) target = $region8
    $region5: #{tpu_custom_call.1} parent=1 // loop_body
      %s19 = ssub.s32 %s14, 1
      %s20 = ssub.s32 %s14, 2
      %s30 = sadd.s32 1, %s23
      %p31 = scmp.ge.s32.totalorder %s30, 1
      %s32 = scalar_select %p31, 0, %s30
      %s33 = sadd.s32 1, %s22
      %s34 = scalar_select %p31, %s33, %s22
      %p35 = scmp.ge.s32.totalorder %s34, 1
      %s36 = scalar_select %p35, 0, %s34
      %s37 = sadd.s32 1, %s21
      %s38 = scalar_select %p35, %s37, %s21
      %p39 = scmp.ge.s32.totalorder %s38, 2
      %s40 = scalar_select %p39, 0, %s38
      %s41 = sadd.s32 %s22, %s23
      %s42 = sadd.s32 %s36, %s32
      %s43 = ssub.s32 %s21, %s40
      %s44 = ssub.s32 %s41, %s42
      %s45 = sor.u32 %s43, %s44
      %p46 = scmp.eq.s32.totalorder %s45, 0
      %s48 = sadd.s32 %s47, 1
      %s49 = scalar_select %p46, %s47, %s48
      %p52 = pneg %p46
      %p53 = scmp.eq.s32.totalorder %s14, 1
      %p54 = por %p52, %p53
      %p55 = scmp.ne.s32.totalorder %s47, %s50
      %p56 = scmp.eq.s32.totalorder %s14, 0
      %p57 = por %p55, %p56
      %p58 = scmp.ne.s32.totalorder %s47, %s50
      %p59 = scmp.eq.s32.totalorder %s19, 1
      %p60 = por %p58, %p59
      %p61 = scmp.ne.s32.totalorder %s50, %s51
      %p62 = scmp.eq.s32.totalorder %s19, 0
      %p63 = por %p61, %p62
      %p64 = scmp.ne.s32.totalorder %s50, %s51
      %p65 = scmp.eq.s32.totalorder %s20, 1
      %p66 = por %p64, %p65
      %p68 = scmp.ne.s32.totalorder %s51, %s67
      %p69 = scmp.eq.s32.totalorder %s20, 0
      %p70 = por %p68, %p69
      %s71 = sadd.s32 %s22, %s23
      %s72 = sadd.s32 %s36, %s32
      %s73 = ssub.s32 %s21, %s40
      %s74 = ssub.s32 %s71, %s72
      %s75 = sor.u32 %s73, %s74
      %p76 = scmp.eq.s32.totalorder %s75, 0
      %s78 = sadd.s32 %s77, 1
      %s79 = scalar_select %p76, %s77, %s78
      %p82 = pneg %p76
      %p83 = scmp.eq.s32.totalorder %s14, 1
      %p84 = por %p82, %p83
      %p85 = scmp.ne.s32.totalorder %s77, %s80
      %p86 = scmp.eq.s32.totalorder %s14, 0
      %p87 = por %p85, %p86
      %p88 = scmp.ne.s32.totalorder %s77, %s80
      %p89 = scmp.eq.s32.totalorder %s19, 1
      %p90 = por %p88, %p89
      %p91 = scmp.ne.s32.totalorder %s80, %s81
      %p92 = scmp.eq.s32.totalorder %s19, 0
      %p93 = por %p91, %p92
      %p94 = scmp.ne.s32.totalorder %s80, %s81
      %p95 = scmp.eq.s32.totalorder %s20, 1
      %p96 = por %p94, %p95
      %p98 = scmp.ne.s32.totalorder %s81, %s97
      %p99 = scmp.eq.s32.totalorder %s20, 0
      %p100 = por %p98, %p99
      %s101 = sadd.s32 %s21, %s22
      %s102 = sadd.s32 %s40, %s36
      %s103 = ssub.s32 %s101, %s102
      %p104 = scmp.eq.s32.totalorder %s103, 0
      %s106 = sadd.s32 %s105, 1
      %s107 = scalar_select %p104, %s105, %s106
      %p110 = pneg %p104
      %p111 = scmp.eq.s32.totalorder %s14, 1
      %p112 = por %p110, %p111
      %p113 = scmp.ne.s32.totalorder %s105, %s108
      %p114 = scmp.eq.s32.totalorder %s14, 0
      %p115 = por %p113, %p114
      %p116 = scmp.ne.s32.totalorder %s105, %s108
      %p117 = scmp.eq.s32.totalorder %s19, 1
      %p118 = por %p116, %p117
      %p119 = scmp.ne.s32.totalorder %s108, %s109
      %p120 = scmp.eq.s32.totalorder %s19, 0
      %p121 = por %p119, %p120
      %p122 = scmp.ne.s32.totalorder %s108, %s109
      %p123 = scmp.eq.s32.totalorder %s20, 1
      %p124 = por %p122, %p123
      %p126 = scmp.ne.s32.totalorder %s109, %s125
      %p127 = scmp.eq.s32.totalorder %s20, 0
      %p128 = por %p126, %p127
      %p129 = scmp.le.s32.totalorder 1, %s14
      %p130 = scmp.lt.s32.totalorder %s14, 3
      %p131 = pnand %p129, %p130
      %p132 = pneg %p131
      // Predicated region
      $region9: #{tpu_custom_call.1} parent=5 // pred_check
        _
      $region10: #{tpu_custom_call.1} parent=5 // pred_check_branch
        %134 = sbr.rel (%p131) target = $region12
      $region11: #{tpu_custom_call.1} parent=5 // pred_region
        %s135 = ssub.s32 %s14, 1
      $region12: #{tpu_custom_call.1} parent=5 // pred_fallthru
        _
      %p136 = scmp.lt.s32.totalorder %s14, 2
      // Predicated region
      $region13: #{tpu_custom_call.1} parent=5 // pred_check
        %p137 = pneg %p136
      $region14: #{tpu_custom_call.1} parent=5 // pred_check_branch
        %139 = sbr.rel (%p137) target = $region16
      $region15: #{tpu_custom_call.1} parent=5 // pred_region
        // Predicated region
        $region17: #{tpu_custom_call.1} parent=15 // pred_check
          %p140 = pneg %p57
        $region18: #{tpu_custom_call.1} parent=15 // pred_check_branch
          %142 = sbr.rel (%p140) target = $region20
        $region19: #{tpu_custom_call.1} parent=15 // pred_region
          %s143 = sand.u32 %s47, 1
          %s144 = scalar_lea.sflag [#allocation8], %s143
          %s145 = sand.u32 %s47, 1
          %s146 = smul.addr %s145, 8
          %s147 = scalar_lea.vmem [#allocation7], %s146
          %s148 = sadd.s32 %s22, %s23
          %s150 = ssub.s32 128, 128
          %151 = vsyncadd %s144, %s150
          %s152 = smul.addr %s21, 4
          %s153 = sadd.s32 %s148, %s152
          %s154 = smul.addr %s153, 32
          %s155 = scalar_lea.hbm %s0, %s154
          %s156 = sshll.u32 %s147, 4
          %s157 = int_to_ptr.vmem [resolvable:$true] %s156
          %162 = dma.hbm_to_vmem [thread:$0]  %s155, 128, %s157, %s144, 32, 32, 2
        $region20: #{tpu_custom_call.1} parent=15 // pred_fallthru
          _
        // Predicated region
        $region21: #{tpu_custom_call.1} parent=15 // pred_check
          %p163 = pneg %p87
        $region22: #{tpu_custom_call.1} parent=15 // pred_check_branch
          %165 = sbr.rel (%p163) target = $region24
        $region23: #{tpu_custom_call.1} parent=15 // pred_region
          %s166 = sand.u32 %s77, 1
          %s167 = scalar_lea.sflag [#allocation10], %s166
          %s168 = sand.u32 %s77, 1
          %s169 = smul.addr %s168, 2
          %s170 = scalar_lea.vmem [#allocation9], %s169
          %s171 = sadd.s32 %s22, %s23
          %s173 = ssub.s32 32, 32
          %174 = vsyncadd %s167, %s173
          %s175 = sadd.s32 %s171, %s21
          %s176 = smul.addr %s175, 32
          %s177 = scalar_lea.hbm %s1, %s176
          %s179 = sshll.u32 %s170, 4
          %s180 = int_to_ptr.vmem [resolvable:$true] %s179
          %182 = dma.hbm_to_vmem [thread:$0]  %s177, 32, %s180, %s167
        $region24: #{tpu_custom_call.1} parent=15 // pred_fallthru
          _
      $region16: #{tpu_custom_call.1} parent=5 // pred_fallthru
        _
      %p183 = scmp.le.s32.totalorder 1, %s14
      %p184 = scmp.lt.s32.totalorder %s14, 3
      %p185 = pnand %p183, %p184
      %p186 = pneg %p185
      // Predicated region
      $region25: #{tpu_custom_call.1} parent=5 // pred_check
        _
      $region26: #{tpu_custom_call.1} parent=5 // pred_check_branch
        %188 = sbr.rel (%p185) target = $region28
      $region27: #{tpu_custom_call.1} parent=5 // pred_region
        %s189 = ssub.s32 %s14, 1
        %s190 = sand.u32 %s50, 1
        %s191 = scalar_lea.sflag [#allocation8], %s190
        %s192 = sand.u32 %s50, 1
        %s193 = smul.addr %s192, 8
        %s194 = scalar_lea.vmem [#allocation7], %s193
        // Predicated region
        $region29: #{tpu_custom_call.1} parent=27 // pred_check
          %p195 = pneg %p63
        $region30: #{tpu_custom_call.1} parent=27 // pred_check_branch
          %197 = sbr.rel (%p195) target = $region32
        $region31: #{tpu_custom_call.1} parent=27 // pred_region
          %198 = dma.done %s191, 128
        $region32: #{tpu_custom_call.1} parent=27 // pred_fallthru
          _
        %s199 = sand.u32 %s80, 1
        %s200 = scalar_lea.sflag [#allocation10], %s199
        %s201 = sand.u32 %s80, 1
        %s202 = smul.addr %s201, 2
        %s203 = scalar_lea.vmem [#allocation9], %s202
        // Predicated region
        $region33: #{tpu_custom_call.1} parent=27 // pred_check
          %p204 = pneg %p93
        $region34: #{tpu_custom_call.1} parent=27 // pred_check_branch
          %206 = sbr.rel (%p204) target = $region36
        $region35: #{tpu_custom_call.1} parent=27 // pred_region
          %207 = dma.done %s200, 32
        $region36: #{tpu_custom_call.1} parent=27 // pred_fallthru
          _
        %s208 = sand.u32 %s50, 1
        %s209 = scalar_lea.sflag [#allocation8], %s208
        %s210 = sand.u32 %s50, 1
        %s211 = smul.addr %s210, 8
        %s212 = scalar_lea.vmem [#allocation7], %s211
        %p213 = pneg %p63
        %p214 = pneg %p60
        %s215 = sand.u32 %s80, 1
        %s216 = scalar_lea.sflag [#allocation10], %s215
        %s217 = sand.u32 %s80, 1
        %s218 = smul.addr %s217, 2
        %s219 = scalar_lea.vmem [#allocation9], %s218
        %p220 = pneg %p93
        %p221 = pneg %p90
        %p222 = pneg %p121
        %p223 = pneg %p118
        %s224 = sadd.s32 %s24, %s25
        %p225 = scmp.lt.s32.totalorder %s224, 1
        %s226 = scalar_select %p225, %s224, 1
        %s227 = smul.addr %s226, 2
        %s228 = smul.addr %s227, 8
        %s229 = scalar_lea.vmem %s2, %s228
        %s230 = sadd.s32 %s25, %s26
        %s231 = sadd.s32 %s25, %s26
        %s232 = sadd.s32 %s24, %s25
        %p233 = scmp.lt.s32.totalorder %s232, 1
        %s234 = scalar_select %p233, %s232, 1
        %s235 = smul.addr %s234, 2
        %s236 = smul.addr %s235, 8
        %s237 = scalar_lea.vmem %s2, %s236
        %s238 = sadd.s32 %s24, %s25
        %p239 = scmp.eq.s32.totalorder %s26, 0
        // Predicated region
        $region37: #{tpu_custom_call.1} parent=27 // pred_check
          %p240 = pneg %p239
        $region38: #{tpu_custom_call.1} parent=27 // pred_check_branch
          %242 = sbr.rel (%p240) target = $region40
        $region39: #{tpu_custom_call.1} parent=27 // pred_region
          %243 = vst [vmem:[#allocation2] sm:$0xf] 0.0
          %244 = vst [vmem:[#allocation3] sm:$0xf] 0.0
          %245 = vst [vmem:[#allocation4] sm:$0xf] 0.0
          %246 = vst [vmem:[#allocation5] sm:$0x1] 0.0
          %247 = vst [vmem:[#allocation6] sm:$0x1] 0.0
        $region40: #{tpu_custom_call.1} parent=27 // pred_fallthru
          _
        %v248 = vld [vmem:[%s194] sm:$0x3]
        %v249 = vld [vmem:[%s194 + $0x2] sm:$0x3]
        %v250 = vld [vmem:[%s194 + $0x4] sm:$0x3]
        %v251 = vld [vmem:[%s194 + $0x6] sm:$0x3]
        %v252 = vld [vmem:[%s203] sm:$0x3]
        %vm253 = vcmask 1041408
        %v254 = vsel %vm253, %v248, -inf
        %v255 = vsel %vm253, %v249, -inf
        %v256 = vsel %vm253, %v250, -inf
        %v257 = vsel %vm253, %v251, -inf
        %v258 = vmax.f32 %v254, %v255
        %v259 = vmax.f32 %v256, %v257
        %v260 = vmax.f32 %v258, %v259
        %v261 = vsub.f32 %v248, %v260
        %v262 = vsub.f32 %v249, %v260
        %v263 = vsub.f32 %v250, %v260
        %v264 = vsub.f32 %v251, %v260
        %v265 = vmul.f32 %v261, 1.442695
        %v266 = vpow.pop %v265
        %v267 = vmul.f32 %v262, 1.442695
        %v268 = vpow.pop %v267
        %v269 = vmul.f32 %v263, 1.442695
        %v270 = vpow.pop %v269
        %v271 = vmul.f32 %v264, 1.442695
        %v272 = vpow.pop %v271
        %v273 = vsel %vm253, %v266, 0.0
        %v274 = vsel %vm253, %v268, 0.0
        %v275 = vadd.f32 %v273, %v274
        %v276 = vsel %vm253, %v270, 0.0
        %v277 = vadd.f32 %v275, %v276
        %v278 = vsel %vm253, %v272, 0.0
        %v279 = vadd.f32 %v277, %v278
        %v280 = vrcp.pop %v279
        %v281 = vmul.f32 %v266, %v280
        %v282 = vmul.f32 %v268, %v280
        %v283 = vmul.f32 %v270, %v280
        %v284 = vmul.f32 %v272, %v280
        %vm285 = vcmp.eq.s32.totalorder %v252, 0
        %vm286 = vcmp.eq.s32.totalorder %v252, 1
        %vm287 = vcmp.eq.s32.totalorder %v252, 2
        %vm288 = vcmp.eq.s32.totalorder %v252, 3
        %v289 = vsel %vm285, 1, 0
        %v290 = vsel %vm286, 1, 0
        %v291 = vsel %vm287, 1, 0
        %v292 = vsel %vm288, 1, 0
        %v293 = vcvt.s32.f32 %v289
        %v294 = vcvt.s32.f32 %v290
        %v295 = vcvt.s32.f32 %v291
        %v296 = vcvt.s32.f32 %v292
        %vm297 = vcmp.ne.s32.totalorder %v252, 255
        %v298 = vsel %vm297, 1, 0
        %v299 = vcvt.s32.f32 %v298
        %v300 = vmul.f32 %v281, %v293
        %v301 = vmul.f32 %v282, %v294
        %v302 = vmul.f32 %v283, %v295
        %v303 = vmul.f32 %v284, %v296
        %v304 = vsel %vm253, %v300, 0.0
        %v305 = vsel %vm253, %v301, 0.0
        %v306 = vadd.f32 %v304, %v305
        %v307 = vsel %vm253, %v302, 0.0
        %v308 = vadd.f32 %v306, %v307
        %v309 = vsel %vm253, %v303, 0.0
        %v310 = vadd.f32 %v308, %v309
        %v311 = vsub.f32 1.0, %v299
        %v312 = vadd.f32 %v310, %v311
        %v313 = vlog2.pop %v312
        %v314 = vmul.f32 %v313, 0.6931472
        %v315 = vld [vmem:[#allocation2] sm:$0xf]
        %v316 = vrot.slane %v304, 4
        %v317 = vadd.f32 %v304, %v316
        %v318 = vrot.slane %v317, 2
        %v319 = vadd.f32 %v317, %v318
        %v320 = vrot.slane %v319, 1
        %v321 = vadd.f32 %v319, %v320
        %v322 = vrot.slane %v305, 4
        %v323 = vadd.f32 %v305, %v322
        %v324 = vrot.slane %v323, 2
        %v325 = vadd.f32 %v323, %v324
        %v326 = vrot.slane %v325, 1
        %v327 = vadd.f32 %v325, %v326
        %v328 = vrot.slane %v307, 4
        %v329 = vadd.f32 %v307, %v328
        %v330 = vrot.slane %v329, 2
        %v331 = vadd.f32 %v329, %v330
        %v332 = vrot.slane %v331, 1
        %v333 = vadd.f32 %v331, %v332
        %v334 = vrot.slane %v309, 4
        %v335 = vadd.f32 %v309, %v334
        %v336 = vrot.slane %v335, 2
        %v337 = vadd.f32 %v335, %v336
        %v338 = vrot.slane %v337, 1
        %v339 = vadd.f32 %v337, %v338
        %vm344 = vcmask 1041409
        %v345 = vsel %vm344, %v327, %v321
        %vm346 = vcmask 1042434
        %v347 = vsel %vm346, %v333, %v345
        %vm348 = vcmask 1043459
        %v349 = vsel %vm348, %v339, %v347
        %v351 = vadd.f32 %v315, %v349
        %352 = vst [vmem:[#allocation2] sm:$0xf] %v351
        %v353 = vld [vmem:[#allocation3] sm:$0xf]
        %v354 = vsel %vm253, %v281, 0.0
        %v355 = vrot.slane %v354, 4
        %v356 = vadd.f32 %v354, %v355
        %v357 = vrot.slane %v356, 2
        %v358 = vadd.f32 %v356, %v357
        %v359 = vrot.slane %v358, 1
        %v360 = vadd.f32 %v358, %v359
        %v361 = vsel %vm253, %v282, 0.0
        %v362 = vrot.slane %v361, 4
        %v363 = vadd.f32 %v361, %v362
        %v364 = vrot.slane %v363, 2
        %v365 = vadd.f32 %v363, %v364
        %v366 = vrot.slane %v365, 1
        %v367 = vadd.f32 %v365, %v366
        %v368 = vsel %vm253, %v283, 0.0
        %v369 = vrot.slane %v368, 4
        %v370 = vadd.f32 %v368, %v369
        %v371 = vrot.slane %v370, 2
        %v372 = vadd.f32 %v370, %v371
        %v373 = vrot.slane %v372, 1
        %v374 = vadd.f32 %v372, %v373
        %v375 = vsel %vm253, %v284, 0.0
        %v376 = vrot.slane %v375, 4
        %v377 = vadd.f32 %v375, %v376
        %v378 = vrot.slane %v377, 2
        %v379 = vadd.f32 %v377, %v378
        %v380 = vrot.slane %v379, 1
        %v381 = vadd.f32 %v379, %v380
        %v386 = vsel %vm344, %v367, %v360
        %v387 = vsel %vm346, %v374, %v386
        %v388 = vsel %vm348, %v381, %v387
        %v390 = vadd.f32 %v353, %v388
        %391 = vst [vmem:[#allocation3] sm:$0xf] %v390
        %v392 = vld [vmem:[#allocation4] sm:$0xf]
        %v393 = vsel %vm253, %v293, 0.0
        %v394 = vrot.slane %v393, 4
        %v395 = vadd.f32 %v393, %v394
        %v396 = vrot.slane %v395, 2
        %v397 = vadd.f32 %v395, %v396
        %v398 = vrot.slane %v397, 1
        %v399 = vadd.f32 %v397, %v398
        %v400 = vsel %vm253, %v294, 0.0
        %v401 = vrot.slane %v400, 4
        %v402 = vadd.f32 %v400, %v401
        %v403 = vrot.slane %v402, 2
        %v404 = vadd.f32 %v402, %v403
        %v405 = vrot.slane %v404, 1
        %v406 = vadd.f32 %v404, %v405
        %v407 = vsel %vm253, %v295, 0.0
        %v408 = vrot.slane %v407, 4
        %v409 = vadd.f32 %v407, %v408
        %v410 = vrot.slane %v409, 2
        %v411 = vadd.f32 %v409, %v410
        %v412 = vrot.slane %v411, 1
        %v413 = vadd.f32 %v411, %v412
        %v414 = vsel %vm253, %v296, 0.0
        %v415 = vrot.slane %v414, 4
        %v416 = vadd.f32 %v414, %v415
        %v417 = vrot.slane %v416, 2
        %v418 = vadd.f32 %v416, %v417
        %v419 = vrot.slane %v418, 1
        %v420 = vadd.f32 %v418, %v419
        %v425 = vsel %vm344, %v406, %v399
        %v426 = vsel %vm346, %v413, %v425
        %v427 = vsel %vm348, %v420, %v426
        %v429 = vadd.f32 %v392, %v427
        %430 = vst [vmem:[#allocation4] sm:$0xf] %v429
        %v431 = vld [vmem:[#allocation5] sm:$0x1]
        %v432 = vsel %vm253, %v314, 0.0
        %v433 = vrot.slane %v432, 4
        %v434 = vadd.f32 %v432, %v433
        %v435 = vrot.slane %v434, 2
        %v436 = vadd.f32 %v434, %v435
        %v437 = vrot.slane %v436, 1
        %v438 = vadd.f32 %v436, %v437
        %v439 = vadd.f32 %v431, %v438
        %440 = vst [vmem:[#allocation5] sm:$0x1] %v439
        %v441 = vld [vmem:[#allocation6] sm:$0x1]
        %v442 = vsel %vm253, %v299, 0.0
        %v443 = vrot.slane %v442, 4
        %v444 = vadd.f32 %v442, %v443
        %v445 = vrot.slane %v444, 2
        %v446 = vadd.f32 %v444, %v445
        %v447 = vrot.slane %v446, 1
        %v448 = vadd.f32 %v446, %v447
        %v449 = vadd.f32 %v441, %v448
        %450 = vst [vmem:[#allocation6] sm:$0x1] %v449
        // Predicated region
        $region41: #{tpu_custom_call.1} parent=27 // pred_check
          %p451 = pneg %p239
        $region42: #{tpu_custom_call.1} parent=27 // pred_check_branch
          %453 = sbr.rel (%p451) target = $region44
        $region43: #{tpu_custom_call.1} parent=27 // pred_region
          %v454 = vld [vmem:[#allocation2] sm:$0xf]
          %455 = vst [vmem:[%s237] sm:$0xf] %v454
          %v456 = vld [vmem:[#allocation3] sm:$0xf]
          %457 = vst [vmem:[%s237 + $0x4] sm:$0xf] %v456
          %v458 = vld [vmem:[#allocation4] sm:$0xf]
          %459 = vst [vmem:[%s237 + $0x8] sm:$0xf] %v458
          %v460 = vld [vmem:[#allocation5] sm:$0x1]
          %461 = vst [vmem:[%s237 + $0xc] sm:$0x1] %v460
          %v462 = vld [vmem:[#allocation6] sm:$0x1]
          %463 = vst [vmem:[%s237 + $0xd] sm:$0x1] %v462
        $region44: #{tpu_custom_call.1} parent=27 // pred_fallthru
          _
        %s464 = sadd.s32 %s24, %s25
        %p465 = scmp.lt.s32.totalorder %s464, 1
        %s466 = scalar_select %p465, %s464, 1
        %s467 = smul.addr %s466, 2
        %s468 = smul.addr %s467, 8
        %s469 = scalar_lea.vmem %s2, %s468
        // Predicated region
        $region45: #{tpu_custom_call.1} parent=27 // pred_check
          %p470 = pneg %p118
        $region46: #{tpu_custom_call.1} parent=27 // pred_check_branch
          %472 = sbr.rel (%p470) target = $region48
        $region47: #{tpu_custom_call.1} parent=27 // pred_region
          %s473 = sadd.s32 %s24, %s25
        $region48: #{tpu_custom_call.1} parent=27 // pred_fallthru
          _
      $region28: #{tpu_custom_call.1} parent=5 // pred_fallthru
        _
      %p474 = scmp.le.s32.totalorder 2, %s14
      // Predicated region
      $region49: #{tpu_custom_call.1} parent=5 // pred_check
        %p475 = pneg %p474
      $region50: #{tpu_custom_call.1} parent=5 // pred_check_branch
        %477 = sbr.rel (%p475) target = $region52
      $region51: #{tpu_custom_call.1} parent=5 // pred_region
        %s478 = ssub.s32 %s14, 2
        // Predicated region
        $region53: #{tpu_custom_call.1} parent=51 // pred_check
          %p479 = pneg %p124
        $region54: #{tpu_custom_call.1} parent=51 // pred_check_branch
          %481 = sbr.rel (%p479) target = $region56
        $region55: #{tpu_custom_call.1} parent=51 // pred_region
          %s482 = sadd.s32 %s27, %s28
          %p483 = scmp.lt.s32.totalorder %s482, 1
          %s484 = scalar_select %p483, %s482, 1
          %s485 = smul.addr %s484, 2
          %s486 = smul.addr %s485, 8
          %s487 = scalar_lea.vmem %s2, %s486
        $region56: #{tpu_custom_call.1} parent=51 // pred_fallthru
          _
      $region52: #{tpu_custom_call.1} parent=5 // pred_fallthru
        _
    $region6: #{tpu_custom_call.1} parent=1 // loop_footer
      %s18 = sadd.s32 1, %s14
    $region7: #{tpu_custom_call.1} parent=1 // loop_footer_branch
      %13 = sbr.rel target = $region3
    $region8: #{tpu_custom_call.1} parent=1 // loop_exit
      _
    %488 = vsyncpa [#allocation8], 1
    %s489 = scalar_lea.sflag [#allocation8], 1
    %490 = vsyncpa %s489, 1
    %491 = vsyncpa [#allocation10], 1
    %s492 = scalar_lea.sflag [#allocation10], 1
    %493 = vsyncpa %s492, 1

</llo_original>
